<compile_context>
chip_gen: v5e
topology: v5e:2x2
jax: 0.10.0
libtpu: 0.0.40
codegen_flags: <defaults>
</compile_context>

<pallas_src>
import functools

import jax
import jax.numpy as jnp
from jax.experimental import pallas as pl
from jax.experimental.pallas import tpu as pltpu


def _round_up(x, m):
    return (x + m - 1) // m * m


# ------------- Pallas kernel: out_tile = x_tile @ W + bias (one step) --------
def _patch_embed_kernel(x_ref, w_ref, b_ref, o_ref):
    # x_ref: (tm, K) activation tile (streamed), w_ref: (K, E) resident weight,
    # b_ref: (1, E) resident bias, o_ref: (tm, E) output tile.
    acc = jnp.dot(x_ref[...], w_ref[...], preferred_element_type=jnp.float32)
    o_ref[...] = (acc + b_ref[...].astype(jnp.float32)).astype(o_ref.dtype)


def _matmul_bias(patches, w_kn, bias_2d, *, tm):
    """patches: (M, K); w_kn: (K, E); bias_2d: (1, E) -> (M, E)."""
    M, K = patches.shape
    K2, E = w_kn.shape
    assert K == K2, (K, K2)

    grid = (pl.cdiv(M, tm),)

    return pl.pallas_call(
        _patch_embed_kernel,
        out_shape=jax.ShapeDtypeStruct((M, E), patches.dtype),
        grid_spec=pltpu.PrefetchScalarGridSpec(
            num_scalar_prefetch=0,
            grid=grid,
            in_specs=[
                # Activations: stream (tm, K) tiles along M.
                pl.BlockSpec((tm, K), lambda i: (i, 0)),
                # Weight: full (K, E), constant index -> fetched once, resident.
                pl.BlockSpec((K, E), lambda i: (0, 0)),
                # Bias: full (1, E), constant index -> fetched once, resident.
                pl.BlockSpec((1, E), lambda i: (0, 0)),
            ],
            out_specs=pl.BlockSpec((tm, E), lambda i: (i, 0)),
        ),
        compiler_params=pltpu.CompilerParams(
            # Single M axis; "parallel" lets the two TensorCores on v7x
            # (and megacore variants) shard the grid.
            dimension_semantics=("parallel",),
            # Big lane-dense tiles need more than the default scoped VMEM on
            # v5e (16 MiB); actual usage (~10-15 MiB at tm=512 for ViT-sized
            # K/E) stays well under v7x's 64 MiB physical VMEM.
            vmem_limit_bytes=64 * 1024 * 1024,
            # Let XLA fuse the patchify transpose / weight.T / bias reshape
            # producers into the Mosaic call instead of materializing them.
            allow_input_fusion=[True, True, True],
        ),
    )(patches, w_kn, bias_2d)


# ---------------- PatchEmbed forward ------------------------------------------
@functools.partial(jax.jit, static_argnames=("patch_size",))
def patch_embed_forward(x, weight, bias, *, patch_size):
    """x: (B, C, H, W); weight: (embed_dim, p*p*C) [nn.Linear layout]; bias: (embed_dim,)."""
    B, C, H, W = x.shape
    p = patch_size
    h, w = H // p, W // p
    E = weight.shape[0]

    # Rearrange 'b c (h p1) (w p2) -> b (h w) (p1 p2 c)'.
    # Layout plumbing only; stays inside this jit and is marked fusible into
    # the Mosaic call via allow_input_fusion above.
    xr = x.reshape(B, C, h, p, w, p)
    xr = xr.transpose(0, 2, 4, 3, 5, 1)               # b h w p1 p2 c
    patches = xr.reshape(B * h * w, p * p * C)        # (M, K), K ordered (p1 p2 c)

    w_kn = weight.T                                   # tiny (K, E) reorder
    bias_2d = bias.reshape(1, E)

    M = B * h * w
    tm = min(512, _round_up(M, 8))                    # big lane-dense M tiles

    out = _matmul_bias(patches, w_kn, bias_2d, tm=tm)  # (M, E)
    return out.reshape(B, h * w, E)


# ---------------- pure-JAX reference (mirrors the PyTorch forward) -------------
def patch_embed_reference(x, weight, bias, *, patch_size):
    B, C, H, W = x.shape
    p = patch_size
    h, w = H // p, W // p
    xr = x.reshape(B, C, h, p, w, p).transpose(0, 2, 4, 3, 5, 1)
    patches = xr.reshape(B, h * w, p * p * C)
    return (
        jnp.einsum("bnk,ek->bne", patches, weight,
                   precision=jax.lax.Precision.HIGHEST)
        + bias
    )


if __name__ == "__main__":
    key = jax.random.PRNGKey(0)
    # Small shapes consistent with the module: B=2, C=4, img=16, patch=4, embed=32.
    B, C, IMG, P, E = 2, 4, 16, 4, 32
    K = P * P * C

    k1, k2, k3 = jax.random.split(key, 3)
    x = jax.random.normal(k1, (B, C, IMG, IMG), dtype=jnp.float32)
    weight = jax.random.normal(k2, (E, K), dtype=jnp.float32) * (1.0 / jnp.sqrt(K))
    bias = jax.random.normal(k3, (E,), dtype=jnp.float32) * 0.01

    y = patch_embed_forward(x, weight, bias, patch_size=P)
    y = jax.block_until_ready(y)

    y_ref = patch_embed_reference(x, weight, bias, patch_size=P)
    assert y.shape == (B, (IMG // P) ** 2, E), y.shape
    assert y.dtype == jnp.float32

    max_err = float(jnp.max(jnp.abs(y - y_ref)))
    # Tolerance covers MXU f32 matmul-pass differences vs. the HIGHEST-precision
    # einsum reference; a layout/ordering bug would produce O(1) errors.
    assert max_err < 2e-2, max_err

    print("KERNEL_OK")
</pallas_src>

<mosaic_0001>
module attributes {stable_mosaic.version = 11 : i64} {
  func.func @_patch_embed_kernel(%arg0: i32, %arg1: memref<32x64xf32, #tpu.memory_space<vmem>>, %arg2: memref<64x32xf32, #tpu.memory_space<vmem>>, %arg3: memref<1x32xf32, #tpu.memory_space<vmem>>, %arg4: memref<32x32xf32, #tpu.memory_space<vmem>>) attributes {dimension_semantics = [#tpu.dimension_semantics<parallel>], iteration_bounds = array<i64: 1>, scalar_prefetch = 0 : i64, scratch_operands = 0 : i64, tpu.core_type = #tpu.core_type<tc>, window_params = [{transform_indices = @transform_0, window_bounds = array<i64: 32, 64>}, {pipeline_mode = #tpu.pipeline_mode<synchronous>, transform_indices = @transform_1, window_bounds = array<i64: 64, 32>}, {pipeline_mode = #tpu.pipeline_mode<synchronous>, transform_indices = @transform_2, window_bounds = array<i64: 1, 32>}, {transform_indices = @transform_3, window_bounds = array<i64: 32, 32>}]} {
    %c0 = arith.constant 0 : index
    %c0_0 = arith.constant 0 : index
    %0 = vector.load %arg1[%c0, %c0_0] : memref<32x64xf32, #tpu.memory_space<vmem>>, vector<32x64xf32>
    %c0_1 = arith.constant 0 : index
    %c0_2 = arith.constant 0 : index
    %1 = vector.load %arg2[%c0_1, %c0_2] : memref<64x32xf32, #tpu.memory_space<vmem>>, vector<64x32xf32>
    %cst = arith.constant dense<0.000000e+00> : vector<32x32xf32>
    %2 = tpu.matmul %0, %1, %cst {dimension_numbers = #tpu.dot_dimension_numbers<[1], [0], [0], [1], [0, 0, 1, 1], [], []>} : vector<32x64xf32>, vector<64x32xf32>, vector<32x32xf32> -> vector<32x32xf32>
    %c0_3 = arith.constant 0 : index
    %c0_4 = arith.constant 0 : index
    %3 = vector.load %arg3[%c0_3, %c0_4] : memref<1x32xf32, #tpu.memory_space<vmem>>, vector<1x32xf32>
    %4 = vector.broadcast %3 : vector<1x32xf32> to vector<32x32xf32>
    %5 = arith.addf %2, %4 : vector<32x32xf32>
    %c0_5 = arith.constant 0 : index
    %c0_6 = arith.constant 0 : index
    %6 = vector.load %arg4[%c0_5, %c0_6] : memref<32x32xf32, #tpu.memory_space<vmem>>, vector<32x32xf32>
    tpu.vector_store %arg4[%c0_5, %c0_6], %5 {strides = array<i32>} : memref<32x32xf32, #tpu.memory_space<vmem>>, vector<32x32xf32>,
    return
  }
  func.func @transform_0(%arg0: i32) -> (i32, i32) {
    %c0_i32 = arith.constant 0 : i32
    %c0_i32_0 = arith.constant 0 : i32
    return %arg0, %c0_i32 : i32, i32
  }
  func.func @transform_1(%arg0: i32) -> (i32, i32) {
    %c0_i32 = arith.constant 0 : i32
    %c0_i32_0 = arith.constant 0 : i32
    %c0_i32_1 = arith.constant 0 : i32
    return %c0_i32, %c0_i32_0 : i32, i32
  }
  func.func @transform_2(%arg0: i32) -> (i32, i32) {
    %c0_i32 = arith.constant 0 : i32
    %c0_i32_0 = arith.constant 0 : i32
    %c0_i32_1 = arith.constant 0 : i32
    return %c0_i32, %c0_i32_0 : i32, i32
  }
  func.func @transform_3(%arg0: i32) -> (i32, i32) {
    %c0_i32 = arith.constant 0 : i32
    %c0_i32_0 = arith.constant 0 : i32
    return %arg0, %c0_i32 : i32, i32
  }
}

</mosaic_0001>

<llo_original>
// kernel: patch_embed_forward.2
$region0: #{patch_embed_forward.2}
  #allocation0 [shape = 'u32[]', space=smem, size = 0x4, offset = 0x4, fixed_abs, tag = 'smem constant byte address 0x4 - core index']
  #allocation1 [shape = 'u32[72,128]{1,0:T(1,128)}', space=vmem, size = 0x9000, scoped, tag = 'internal scratch']
  %s0 = inlined_call_operand.vmem [shape: f32[32,64], index: 0, kind: input, shape index: {}]
  %s1 = inlined_call_operand.vmem [shape: f32[32,64], index: 1, kind: input, shape index: {}]
  %s2 = inlined_call_operand.vmem [shape: f32[32], index: 2, kind: input, shape index: {}]
  %s3 = inlined_call_operand.hbm [shape: f32[32,32], index: 3, kind: output, shape index: {}]
  %s4 = sld [smem:[#allocation0]]
  $region22: #{patch_embed_forward.2} parent=0
    _
  %s6 = ssub.s32 1, %s4
  %s7 = scalar_select 0, %s6, %s4
  $region1: #{patch_embed_forward.2} parent=0
    #allocation2 [shape = 'u8[16384]{0}', space=vmem, size = 0x4000, scoped, tag = 'output window, operand 0, single buffered']
    #allocation3 [shape = 's32[1]{0}', space=sflag, size = 0x4, scoped, tag = 'scoped memory for patch_embed_forward.2']
    #allocation4 [shape = 'u8[32768]{0}', space=vmem, size = 0x8000, dematerialized = true, scoped, tag = 'FusionAdapter Buffer %fusion.1 = f32[64,32]{1,0:T(8,128)} fusion(%param_1.2), kind=kLoop, calls=%fused_computation.1.clone, metadata={op_name="jit(patch_embed_forward)/transpose" stack_frame_id=10}']
    #allocation5 [shape = 'u8[512]{0}', space=vmem, size = 0x400, dematerialized = true, scoped, tag = 'FusionAdapter Buffer %fusion.2 = f32[1,32]{1,0:T(1,128)} fusion(%param_2.2), kind=kLoop, calls=%fused_computation.2.clone, metadata={op_name="jit(patch_embed_forward)/reshape" stack_frame_id=11}']
    %8 = vsyncpa [#allocation3], 0
    // Predicated region
    $region2: #{patch_embed_forward.2} parent=1 // pred_check
      _
    $region3: #{patch_embed_forward.2} parent=1 // pred_check_branch
      %10 = sbr.rel (0) target = $region5
    $region4: #{patch_embed_forward.2} parent=1 // pred_region
      _
    $region5: #{patch_embed_forward.2} parent=1 // pred_fallthru
      _
    // Predicated region
    $region6: #{patch_embed_forward.2} parent=1 // pred_check
      _
    $region7: #{patch_embed_forward.2} parent=1 // pred_check_branch
      %12 = sbr.rel (0) target = $region9
    $region8: #{patch_embed_forward.2} parent=1 // pred_region
      _
    $region9: #{patch_embed_forward.2} parent=1 // pred_fallthru
      _
    // Predicated region
    $region10: #{patch_embed_forward.2} parent=1 // pred_check
      _
    $region11: #{patch_embed_forward.2} parent=1 // pred_check_branch
      %14 = sbr.rel (0) target = $region13
    $region12: #{patch_embed_forward.2} parent=1 // pred_region
      _
    $region13: #{patch_embed_forward.2} parent=1 // pred_fallthru
      _
    %v15 = vld [vmem:[%s1] sm:$0xff]
    %s17 = ssub.s32 256, 1
    %18 = vst [vmem:[#allocation4] sm:%s17] %v15
    %s19 = scalar_lea.vmem %s1, 8
    %v20 = vld [vmem:[%s19] sm:$0xff]
    %s21 = scalar_lea.vmem [#allocation4], 8
    %s23 = ssub.s32 256, 1
    %24 = vst [vmem:[%s21] sm:%s23] %v20
    %s25 = scalar_lea.vmem %s1, 16
    %v26 = vld [vmem:[%s25] sm:$0xff]
    %s27 = scalar_lea.vmem [#allocation4], 16
    %s29 = ssub.s32 256, 1
    %30 = vst [vmem:[%s27] sm:%s29] %v26
    %s31 = scalar_lea.vmem %s1, 24
    %v32 = vld [vmem:[%s31] sm:$0xff]
    %s33 = scalar_lea.vmem [#allocation4], 24
    %s35 = ssub.s32 256, 1
    %36 = vst [vmem:[%s33] sm:%s35] %v32
    %s37 = scalar_lea.vmem %s1, 32
    %v38 = vld [vmem:[%s37] sm:$0xff]
    %s39 = scalar_lea.vmem [#allocation4], 32
    %s41 = ssub.s32 256, 1
    %42 = vst [vmem:[%s39] sm:%s41] %v38
    %s43 = scalar_lea.vmem %s1, 40
    %v44 = vld [vmem:[%s43] sm:$0xff]
    %s45 = scalar_lea.vmem [#allocation4], 40
    %s47 = ssub.s32 256, 1
    %48 = vst [vmem:[%s45] sm:%s47] %v44
    %s49 = scalar_lea.vmem %s1, 48
    %v50 = vld [vmem:[%s49] sm:$0xff]
    %s51 = scalar_lea.vmem [#allocation4], 48
    %s53 = ssub.s32 256, 1
    %54 = vst [vmem:[%s51] sm:%s53] %v50
    %s55 = scalar_lea.vmem %s1, 56
    %v56 = vld [vmem:[%s55] sm:$0xff]
    %s57 = scalar_lea.vmem [#allocation4], 56
    %s59 = ssub.s32 256, 1
    %60 = vst [vmem:[%s57] sm:%s59] %v56
    %v61 = vld [vmem:[%s2] sm:$0x1]
    %s63 = ssub.s32 2, 1
    %64 = vst [vmem:[#allocation5] sm:%s63] %v61
    %v65 = vld [vmem:[%s0] sm:$0xff]
    %v66 = vld [vmem:[%s0 + $0x8] sm:$0xff]
    %v67 = vld [vmem:[%s0 + $0x10] sm:$0xff]
    %v68 = vld [vmem:[%s0 + $0x18] sm:$0xff]
    %v69 = vld [vmem:[#allocation4] sm:$0xff]
    %v70 = vld [vmem:[#allocation4 + $0x8] sm:$0xff]
    %v71 = vld [vmem:[#allocation4 + $0x10] sm:$0xff]
    %v72 = vld [vmem:[#allocation4 + $0x18] sm:$0xff]
    %v73 = vld [vmem:[#allocation4 + $0x20] sm:$0xff]
    %v74 = vld [vmem:[#allocation4 + $0x28] sm:$0xff]
    %v75 = vld [vmem:[#allocation4 + $0x30] sm:$0xff]
    %v76 = vld [vmem:[#allocation4 + $0x38] sm:$0xff]
    %v77 = vld [vmem:[#allocation5] sm:$0x1]
    %v79 = vperm.slane %v77, 0
    %vm81 = vcmask 523264
    %v83 = vsel %vm81, %v65, 0
    %v86 = vsel %vm81, %v66, 0
    %v89 = vsel %vm81, %v67, 0
    %v92 = vsel %vm81, %v68, 0
    %94 = vmatpush.msra.mxu0 0.0
    %95 = vmatpush.msra.mxu0 0.0
    %96 = vmatpush.msra.mxu0 0.0
    %97 = vmatpush.msra.mxu0 0.0
    %98 = vmatpush.msra.mxu0 0.0
    %99 = vmatpush.msra.mxu0 0.0
    %100 = vmatpush.msra.mxu0 0.0
    %101 = vmatpush.msra.mxu0 0.0
    %102 = vmatpush.msra.mxu0 %v76
    %103 = vmatpush.msra.mxu0 %v75
    %104 = vmatpush.msra.mxu0 %v74
    %105 = vmatpush.msra.mxu0 %v73
    %106 = vmatpush.msra.mxu0 %v72
    %107 = vmatpush.msra.mxu0 %v71
    %108 = vmatpush.msra.mxu0 %v70
    %109 = vmatpush.msra.mxu0 %v69
    %110 = vmatmul.f32.gmra.mxu0 %v83
    %v111 = vpop.f32.mrf.mxu0
    %v112 = vadd.f32 %v79, %v111
    %113 = vmatmul.f32.gmra.mxu0 %v86
    %v114 = vpop.f32.mrf.mxu0
    %v115 = vadd.f32 %v79, %v114
    %116 = vmatmul.f32.gmra.mxu0 %v89
    %v117 = vpop.f32.mrf.mxu0
    %v118 = vadd.f32 %v79, %v117
    %119 = vmatmul.f32.gmra.mxu0 %v92
    %v120 = vpop.f32.mrf.mxu0
    %v121 = vadd.f32 %v79, %v120
    %122 = vdwg.mxu0
    %vm123 = vcmask 261120
    %124 = vst.msk [vmem:[#allocation2] sm:$0xff] %vm123, %v112
    %125 = vst.msk [vmem:[#allocation2 + $0x8] sm:$0xff] %vm123, %v115
    %126 = vst.msk [vmem:[#allocation2 + $0x10] sm:$0xff] %vm123, %v118
    %127 = vst.msk [vmem:[#allocation2 + $0x18] sm:$0xff] %vm123, %v121
    // Predicated region
    $region14: #{patch_embed_forward.2} parent=1 // pred_check
      _
    $region15: #{patch_embed_forward.2} parent=1 // pred_check_branch
      %129 = sbr.rel (0) target = $region17
    $region16: #{patch_embed_forward.2} parent=1 // pred_region
      %131 = vsyncadd [#allocation3], 0
      %s132 = sshll.u32 [#allocation2], 4
      %s133 = int_to_ptr.vmem [resolvable:$true] %s132
      %s134 = sshll.u32 %s3, 4
      %s135 = int_to_ptr.hbm [resolvable:$true] %s134
      %140 = dma.vmem_to_hbm [thread:$0]  %s133, 512, %s135, [#allocation3], 128, 128, 8
    $region17: #{patch_embed_forward.2} parent=1 // pred_fallthru
      _
    // Predicated region
    $region18: #{patch_embed_forward.2} parent=1 // pred_check
      _
    $region19: #{patch_embed_forward.2} parent=1 // pred_check_branch
      %142 = sbr.rel (0) target = $region21
    $region20: #{patch_embed_forward.2} parent=1 // pred_region
      %144 = dma.done [#allocation3], 512
    $region21: #{patch_embed_forward.2} parent=1 // pred_fallthru
      _
    %145 = vsyncpa [#allocation3], 1

</llo_original>
